<compile_context>
chip_gen: v6e
topology: v6e:2x2x1
jax: 0.10.0
libtpu: 0.0.40
codegen_flags: <defaults>
</compile_context>

<pallas_src>
import numpy as np
import jax
import jax.numpy as jnp
from jax.experimental import pallas as pl
from jax.experimental.pallas import tpu as pltpu

NUM_LEVELS = 24   # matches RandomPhaseFeatureMap default
K_PAD = 8         # cartesian dim 3 zero-padded to 8 for a clean MXU K tile


# ----------------------------------------------------------------------------
# Parameter construction (deterministic host-side numpy / JAX "glue")
# ----------------------------------------------------------------------------
def legendre_coeff_table(num_levels):
    """Row i: coefficients of C_i^(1/2)(x) == Legendre P_i(x), highest degree first,
    right-aligned in a row of length num_levels + 1 (leading zeros)."""
    polys = [np.array([1.0]), np.array([1.0, 0.0])]
    for n in range(2, num_levels):
        p = np.polysub(np.polymul([2.0 * n - 1.0, 0.0], polys[n - 1]),
                       (n - 1.0) * polys[n - 2]) / float(n)
        polys.append(p)
    table = np.zeros((num_levels, num_levels + 1), dtype=np.float64)
    for i in range(num_levels):
        table[i, -(i + 1):] = polys[i]
    return table


def matern_spectrum(num_levels, nu, lengthscale):
    """Matern spectrum on S^2 over Laplace-Beltrami eigenvalues l(l+1)."""
    ls = np.arange(num_levels, dtype=np.float64)
    lam = ls * (ls + 1.0)
    spec = (2.0 * nu / lengthscale ** 2 + lam) ** (-(nu + 1.0))   # dim/2 = 1 on S^2
    return spec / spec.sum()


def build_params(hidden_dim, output_dim, nu, lengthscale, amplitude, key):
    k_lvl, k_noise, k_w = jax.random.split(key, 3)

    spec = matern_spectrum(NUM_LEVELS, nu, lengthscale)
    levels = np.asarray(
        jax.random.choice(k_lvl, NUM_LEVELS, shape=(hidden_dim,),
                          p=jnp.asarray(spec)))                            # (N,)

    noise = np.asarray(jax.random.normal(k_noise, (hidden_dim, 3)))
    noise = noise / np.linalg.norm(noise, axis=1, keepdims=True)           # (N, 3)

    table = legendre_coeff_table(NUM_LEVELS)                               # (24, 25)
    coeffs = table[levels]                                                 # (N, 25)

    c = (2.0 * levels + 1.0) / (4.0 * np.pi)                               # (N,)
    scale = np.sqrt(c) / np.sqrt(hidden_dim * 0.079) * amplitude           # (N,)
    # Fold the per-feature scale into the coefficients: scale*P(u) = sum (scale*c_k) u^k
    coeffs_scaled = coeffs * scale[:, None]                                # (N, 25)

    # Perf: trim dead high-degree rows. The polynomial degree never exceeds the
    # maximum sampled level, so only the last (L_max + 1) coefficient columns can
    # be non-zero. This sets the static Horner length inside the kernel.
    n_coef = max(int(levels.max()) + 1, 2)        # >= 2 keeps the Horner loop shape
    coeffs_trim = coeffs_scaled[:, -n_coef:]                               # (N, n_coef)

    W = np.asarray(jax.random.normal(k_w, (output_dim, hidden_dim)))       # (O, N)

    # Zero-pad: cartesian K 3 -> K_PAD, output dim O -> multiple of 128 lanes
    # (unmasked lane-dense vst; wrapper slices [:, :O]).
    o_pad = max(128, ((output_dim + 127) // 128) * 128)
    noise_t_pad = np.zeros((K_PAD, hidden_dim), dtype=np.float64)
    noise_t_pad[:3, :] = noise.T                                           # (8, N)
    w_t_pad = np.zeros((hidden_dim, o_pad), dtype=np.float64)
    w_t_pad[:, :output_dim] = W.T                                          # (N, O_pad)

    params = dict(
        noise_t=jnp.asarray(noise_t_pad, jnp.float32),      # (K_PAD, N)
        coeffs_t=jnp.asarray(coeffs_trim.T, jnp.float32),   # (n_coef, N), high degree first
        w_t=jnp.asarray(w_t_pad, jnp.float32),               # (N, O_pad)
        output_dim=output_dim,
    )
    ref = dict(levels=levels, noise=noise, coeffs=coeffs, W=W)
    return params, ref


# ----------------------------------------------------------------------------
# Pallas kernel
# ----------------------------------------------------------------------------
def _matern_rff_kernel(x_ref, noise_t_ref, coeffs_ref, w_t_ref, out_ref):
    # Projection on the MXU: u[b, n] = X[b] . noise[n]   (K zero-padded to 8).
    u = jnp.dot(x_ref[...], noise_t_ref[...],
                preferred_element_type=jnp.float32)            # (tb, N)

    # Horner evaluation of the per-feature, scale-folded Legendre polynomial.
    # Static trip count = n_coef - 1, trimmed to the max sampled level at build
    # time. Coefficient rows are (1, N) slices -> one sublane broadcast per
    # unrolled step; the mul+add chain is the binding VALU work of the tile.
    n_coef = coeffs_ref.shape[0]
    cur = coeffs_ref[0:1, :] * u
    for i in range(1, n_coef - 1):
        cur = (cur + coeffs_ref[i:i + 1, :]) * u
    f = cur + coeffs_ref[n_coef - 1:n_coef, :]                 # (tb, N)

    # Output projection (lane-dense, zero-padded O) on the MXU.
    # TODO(synk): for hidden_dim > 128, chunk N here (u/Horner per 128-512 lane
    # chunk, acc += f_chunk @ w_chunk into a (tb, o_pad) f32 scratch) so the
    # output matmul overlaps the Horner; a pure no-op at N = 128.
    out_ref[...] = jnp.dot(f, w_t_ref[...],
                           preferred_element_type=jnp.float32
                           ).astype(out_ref.dtype)             # (tb, O_pad)


def matern_rff_forward(x, params, *, tb=128):
    """x: (B, 2) lon-lat in radians.  Returns (B, output_dim) float32."""
    B = x.shape[0]
    N = params["noise_t"].shape[1]
    n_coef = params["coeffs_t"].shape[0]
    o_pad = params["w_t"].shape[1]
    out_dim = params["output_dim"]

    tb = min(tb, B)
    assert B % tb == 0, "batch must be a multiple of the batch tile"

    # Spherical -> cartesian on lane-dense (B,) vectors (cos(lat) hoisted); pad K to 8.
    lon = x[:, 0].astype(jnp.float32)
    lat = x[:, 1].astype(jnp.float32)
    clat = jnp.cos(lat)
    X = jnp.stack([clat * jnp.cos(lon),
                   clat * jnp.sin(lon),
                   jnp.sin(lat)], axis=1)                      # (B, 3)
    X = jnp.pad(X, ((0, 0), (0, K_PAD - 3)))                   # (B, K_PAD)

    grid = (B // tb,)
    batched = lambda i: (i, 0)
    const = lambda i: (0, 0)

    # VMEM budget: grid-varying operands double-buffered, constants fetched once
    # (budgeted x2: double-buffered by default), plus the (tb, N) u/cur/f
    # intermediates. Floor at 16 MiB (the smallest per-generation default) so
    # small configs keep the default while large hidden_dim/o_pad still compile.
    const_bytes = 4 * (K_PAD * N + n_coef * N + N * o_pad)
    io_bytes = 4 * tb * (K_PAD + o_pad)
    work_bytes = 4 * tb * N * 4
    vmem_limit = int(max(2 * (const_bytes + io_bytes) + work_bytes + (2 << 20),
                         16 << 20))

    out = pl.pallas_call(
        _matern_rff_kernel,
        out_shape=jax.ShapeDtypeStruct((B, o_pad), jnp.float32),
        grid=grid,
        in_specs=[
            pl.BlockSpec((tb, K_PAD), batched),      # X (cartesian, K padded)
            pl.BlockSpec((K_PAD, N), const),         # noise.T (grid-constant)
            pl.BlockSpec((n_coef, N), const),        # trimmed, scale-folded coeffs.T
            pl.BlockSpec((N, o_pad), const),         # W.T (lane-padded)
        ],
        out_specs=pl.BlockSpec((tb, o_pad), batched),
        compiler_params=pltpu.CompilerParams(
            dimension_semantics=("parallel",),       # shards grid steps across v7x TCs
            vmem_limit_bytes=vmem_limit),
    )(X, params["noise_t"], params["coeffs_t"], params["w_t"])

    return out[:, :out_dim]


# ----------------------------------------------------------------------------
# Pure-numpy reference (mirrors the PyTorch forward exactly, float64)
# ----------------------------------------------------------------------------
def ref_forward(x, ref, amplitude, hidden_dim):
    x = np.asarray(x, np.float64)
    lon, lat = x[:, 0], x[:, 1]
    X = np.stack([np.cos(lat) * np.cos(lon),
                  np.cos(lat) * np.sin(lon),
                  np.sin(lat)], axis=1)                             # (B, 3)
    UXT = ref["noise"] @ X.T                                        # (N, B)
    coeffs = ref["coeffs"]                                          # (N, 25)
    cur = np.zeros_like(UXT)
    for i in range(coeffs.shape[1] - 1):
        cur = (cur + coeffs[:, i:i + 1]) * UXT
    cur = cur + coeffs[:, -1:]
    c = (2.0 * ref["levels"] + 1.0) / (4.0 * np.pi)
    fX = np.sqrt(c)[:, None] * cur / np.sqrt(hidden_dim * 0.079)    # (N, B)
    feats = fX.T * amplitude                                        # (B, N)
    return feats @ ref["W"].T                                       # (B, O)


# ----------------------------------------------------------------------------
if __name__ == "__main__":
    # grid = B // tb = 2 parallel steps -> both v7x TensorCores get work;
    # on v5e/v6e the two steps simply pipeline on the single TC.
    B, hidden_dim, output_dim = 256, 128, 64
    lengthscale, nu, amplitude = 1.0, 1.5, 1.0

    key = jax.random.PRNGKey(0)
    k_params, k_x = jax.random.split(key)

    params, ref = build_params(hidden_dim, output_dim, nu, lengthscale,
                               amplitude, k_params)

    k_lon, k_lat = jax.random.split(k_x)
    lon = jax.random.uniform(k_lon, (B,), minval=-np.pi, maxval=np.pi)
    lat = jax.random.uniform(k_lat, (B,), minval=-np.pi / 2, maxval=np.pi / 2)
    x = jnp.stack([lon, lat], axis=1).astype(jnp.float32)           # (B, 2)

    out = matern_rff_forward(x, params, tb=128)
    out = jax.block_until_ready(out)

    expected = ref_forward(np.asarray(x), ref, amplitude, hidden_dim)
    np.testing.assert_allclose(np.asarray(out), expected, rtol=2e-3, atol=2e-3)

    print("KERNEL_OK")
</pallas_src>

<mosaic_0001>
module attributes {stable_mosaic.version = 11 : i64} {
  func.func @_matern_rff_kernel(%arg0: i32, %arg1: memref<128x8xf32, #tpu.memory_space<vmem>>, %arg2: memref<8x128xf32, #tpu.memory_space<vmem>>, %arg3: memref<3x128xf32, #tpu.memory_space<vmem>>, %arg4: memref<128x128xf32, #tpu.memory_space<vmem>>, %arg5: memref<128x128xf32, #tpu.memory_space<vmem>>) attributes {dimension_semantics = [#tpu.dimension_semantics<parallel>], iteration_bounds = array<i64: 2>, scalar_prefetch = 0 : i64, scratch_operands = 0 : i64, tpu.core_type = #tpu.core_type<tc>, window_params = [{transform_indices = @transform_0, window_bounds = array<i64: 128, 8>}, {pipeline_mode = #tpu.pipeline_mode<synchronous>, transform_indices = @transform_1, window_bounds = array<i64: 8, 128>}, {pipeline_mode = #tpu.pipeline_mode<synchronous>, transform_indices = @transform_2, window_bounds = array<i64: 3, 128>}, {pipeline_mode = #tpu.pipeline_mode<synchronous>, transform_indices = @transform_3, window_bounds = array<i64: 128, 128>}, {transform_indices = @transform_4, window_bounds = array<i64: 128, 128>}]} {
    %c0 = arith.constant 0 : index
    %c0_0 = arith.constant 0 : index
    %0 = vector.load %arg1[%c0, %c0_0] : memref<128x8xf32, #tpu.memory_space<vmem>>, vector<128x8xf32>
    %c0_1 = arith.constant 0 : index
    %c0_2 = arith.constant 0 : index
    %1 = vector.load %arg2[%c0_1, %c0_2] : memref<8x128xf32, #tpu.memory_space<vmem>>, vector<8x128xf32>
    %cst = arith.constant dense<0.000000e+00> : vector<128x128xf32>
    %2 = tpu.matmul %0, %1, %cst {dimension_numbers = #tpu.dot_dimension_numbers<[1], [0], [0], [1], [0, 0, 1, 1], [], []>} : vector<128x8xf32>, vector<8x128xf32>, vector<128x128xf32> -> vector<128x128xf32>
    %c0_3 = arith.constant 0 : index
    %c0_4 = arith.constant 0 : index
    %3 = vector.load %arg3[%c0_3, %c0_4] : memref<3x128xf32, #tpu.memory_space<vmem>>, vector<1x128xf32>
    %4 = vector.broadcast %3 : vector<1x128xf32> to vector<128x128xf32>
    %5 = arith.mulf %4, %2 : vector<128x128xf32>
    %c1 = arith.constant 1 : index
    %c0_5 = arith.constant 0 : index
    %6 = vector.load %arg3[%c1, %c0_5] : memref<3x128xf32, #tpu.memory_space<vmem>>, vector<1x128xf32>
    %7 = vector.broadcast %6 : vector<1x128xf32> to vector<128x128xf32>
    %8 = arith.addf %5, %7 : vector<128x128xf32>
    %9 = arith.mulf %8, %2 : vector<128x128xf32>
    %c2 = arith.constant 2 : index
    %c0_6 = arith.constant 0 : index
    %10 = vector.load %arg3[%c2, %c0_6] : memref<3x128xf32, #tpu.memory_space<vmem>>, vector<1x128xf32>
    %11 = vector.broadcast %10 : vector<1x128xf32> to vector<128x128xf32>
    %12 = arith.addf %9, %11 : vector<128x128xf32>
    %c0_7 = arith.constant 0 : index
    %c0_8 = arith.constant 0 : index
    %13 = vector.load %arg4[%c0_7, %c0_8] : memref<128x128xf32, #tpu.memory_space<vmem>>, vector<128x128xf32>
    %cst_9 = arith.constant dense<0.000000e+00> : vector<128x128xf32>
    %14 = tpu.matmul %12, %13, %cst_9 {dimension_numbers = #tpu.dot_dimension_numbers<[1], [0], [0], [1], [0, 0, 1, 1], [], []>} : vector<128x128xf32>, vector<128x128xf32>, vector<128x128xf32> -> vector<128x128xf32>
    %c0_10 = arith.constant 0 : index
    %c0_11 = arith.constant 0 : index
    %15 = vector.load %arg5[%c0_10, %c0_11] : memref<128x128xf32, #tpu.memory_space<vmem>>, vector<128x128xf32>
    tpu.vector_store %arg5[%c0_10, %c0_11], %14 {strides = array<i32>} : memref<128x128xf32, #tpu.memory_space<vmem>>, vector<128x128xf32>,
    return
  }
  func.func @transform_0(%arg0: i32) -> (i32, i32) {
    %c0_i32 = arith.constant 0 : i32
    %c0_i32_0 = arith.constant 0 : i32
    return %arg0, %c0_i32 : i32, i32
  }
  func.func @transform_1(%arg0: i32) -> (i32, i32) {
    %c0_i32 = arith.constant 0 : i32
    %c0_i32_0 = arith.constant 0 : i32
    %c0_i32_1 = arith.constant 0 : i32
    return %c0_i32, %c0_i32_0 : i32, i32
  }
  func.func @transform_2(%arg0: i32) -> (i32, i32) {
    %c0_i32 = arith.constant 0 : i32
    %c0_i32_0 = arith.constant 0 : i32
    %c0_i32_1 = arith.constant 0 : i32
    return %c0_i32, %c0_i32_0 : i32, i32
  }
  func.func @transform_3(%arg0: i32) -> (i32, i32) {
    %c0_i32 = arith.constant 0 : i32
    %c0_i32_0 = arith.constant 0 : i32
    %c0_i32_1 = arith.constant 0 : i32
    return %c0_i32, %c0_i32_0 : i32, i32
  }
  func.func @transform_4(%arg0: i32) -> (i32, i32) {
    %c0_i32 = arith.constant 0 : i32
    %c0_i32_0 = arith.constant 0 : i32
    return %arg0, %c0_i32 : i32, i32
  }
}

</mosaic_0001>

<llo_original>
// kernel: tpu_custom_call.1
$region0: #{tpu_custom_call.1}
  #allocation0 [shape = 'u32[]', space=smem, size = 0x4, offset = 0x4, fixed_abs, tag = 'smem constant byte address 0x4 - core index']
  #allocation1 [shape = 'u32[144,128]{1,0:T(1,128)}', space=vmem, size = 0x12000, scoped, tag = 'internal scratch']
  %s0 = inlined_call_operand.vmem [shape: f32[256,8], index: 0, kind: input, shape index: {}]
  %s1 = inlined_call_operand.vmem [shape: f32[8,128], index: 1, kind: input, shape index: {}]
  %s2 = inlined_call_operand.vmem [shape: f32[3,128], index: 2, kind: input, shape index: {}]
  %s3 = inlined_call_operand.vmem [shape: f32[128,128], index: 3, kind: input, shape index: {}]
  %s4 = inlined_call_operand.hbm [shape: f32[256,128], index: 4, kind: output, shape index: {}]
  %s5 = sld [smem:[#allocation0]]
  $region49: #{tpu_custom_call.1} parent=0
    _
  %s7 = ssub.s32 1, %s5
  %s8 = scalar_select 0, %s7, %s5
  $region1: #{tpu_custom_call.1} parent=0
    #allocation2 [shape = 'u8[131072]{0}', space=vmem, size = 0x20000, scoped, tag = 'output window, operand 0']
    #allocation3 [shape = 's32[2]{0}', space=sflag, size = 0x8, scoped, tag = 'scoped memory for tpu_custom_call.1']
    %9 = vsyncpa [#allocation3], 0
    %s10 = scalar_lea.sflag [#allocation3], 1
    %11 = vsyncpa %s10, 0
    loop: start=0, step=1, limit=4
    $region2: #{tpu_custom_call.1} parent=1 // loop_pre_header
      _
    $region3: #{tpu_custom_call.1} parent=1 // loop_header
      %s13 = sphi 0, %s17
      %p14 = scmp.ge.s32.totalorder %s13, 4
      %s23 = sphi 0, %s25
      %s26 = sphi 0, %s23
      %s27 = sphi 0, %s26
      %s43 = sphi 0, %s27
      %s47 = sphi 0, %s47
      %s49 = sphi 0, %s47
      %s50 = sphi 0, %s49
      %s64 = sphi 0, %s50
      %s68 = sphi 0, %s68
      %s70 = sphi 0, %s68
      %s71 = sphi 0, %s70
      %s85 = sphi 0, %s71
      %s89 = sphi 0, %s89
      %s91 = sphi 0, %s89
      %s92 = sphi 0, %s91
      %s106 = sphi 0, %s92
      %s112 = sphi 0, %s114
      %s115 = sphi 0, %s112
      %s116 = sphi 0, %s115
      %s132 = sphi 0, %s116
    $region4: #{tpu_custom_call.1} parent=1 // loop_header_branch
      %16 = sbr.rel (%p14) target = $region8
    $region5: #{tpu_custom_call.1} parent=1 // loop_body
      %s18 = ssub.s32 %s13, 1
      %s19 = ssub.s32 %s13, 2
      %s20 = sadd.s32 %s13, 1
      %s21 = ssub.s32 %s13, %s20
      %p22 = scmp.eq.s32.totalorder %s21, 0
      %s24 = sadd.s32 %s23, 1
      %s25 = scalar_select %p22, %s23, %s24
      %p28 = pneg %p22
      %p29 = scmp.eq.s32.totalorder %s13, 1
      %p30 = por %p28, %p29
      %p31 = scmp.ne.s32.totalorder %s23, %s26
      %p32 = scmp.eq.s32.totalorder %s13, 0
      %p33 = por %p31, %p32
      %p34 = scmp.ne.s32.totalorder %s23, %s26
      %p35 = scmp.eq.s32.totalorder %s18, 1
      %p36 = por %p34, %p35
      %p37 = scmp.ne.s32.totalorder %s26, %s27
      %p38 = scmp.eq.s32.totalorder %s18, 0
      %p39 = por %p37, %p38
      %p40 = scmp.ne.s32.totalorder %s26, %s27
      %p41 = scmp.eq.s32.totalorder %s19, 1
      %p42 = por %p40, %p41
      %p44 = scmp.ne.s32.totalorder %s27, %s43
      %p45 = scmp.eq.s32.totalorder %s19, 0
      %p46 = por %p44, %p45
      %s48 = sadd.s32 %s47, 1
      %p51 = scmp.eq.s32.totalorder %s13, 1
      %p52 = scmp.ne.s32.totalorder %s47, %s49
      %p53 = scmp.eq.s32.totalorder %s13, 0
      %p54 = por %p52, %p53
      %p55 = scmp.ne.s32.totalorder %s47, %s49
      %p56 = scmp.eq.s32.totalorder %s18, 1
      %p57 = por %p55, %p56
      %p58 = scmp.ne.s32.totalorder %s49, %s50
      %p59 = scmp.eq.s32.totalorder %s18, 0
      %p60 = por %p58, %p59
      %p61 = scmp.ne.s32.totalorder %s49, %s50
      %p62 = scmp.eq.s32.totalorder %s19, 1
      %p63 = por %p61, %p62
      %p65 = scmp.ne.s32.totalorder %s50, %s64
      %p66 = scmp.eq.s32.totalorder %s19, 0
      %p67 = por %p65, %p66
      %s69 = sadd.s32 %s68, 1
      %p72 = scmp.eq.s32.totalorder %s13, 1
      %p73 = scmp.ne.s32.totalorder %s68, %s70
      %p74 = scmp.eq.s32.totalorder %s13, 0
      %p75 = por %p73, %p74
      %p76 = scmp.ne.s32.totalorder %s68, %s70
      %p77 = scmp.eq.s32.totalorder %s18, 1
      %p78 = por %p76, %p77
      %p79 = scmp.ne.s32.totalorder %s70, %s71
      %p80 = scmp.eq.s32.totalorder %s18, 0
      %p81 = por %p79, %p80
      %p82 = scmp.ne.s32.totalorder %s70, %s71
      %p83 = scmp.eq.s32.totalorder %s19, 1
      %p84 = por %p82, %p83
      %p86 = scmp.ne.s32.totalorder %s71, %s85
      %p87 = scmp.eq.s32.totalorder %s19, 0
      %p88 = por %p86, %p87
      %s90 = sadd.s32 %s89, 1
      %p93 = scmp.eq.s32.totalorder %s13, 1
      %p94 = scmp.ne.s32.totalorder %s89, %s91
      %p95 = scmp.eq.s32.totalorder %s13, 0
      %p96 = por %p94, %p95
      %p97 = scmp.ne.s32.totalorder %s89, %s91
      %p98 = scmp.eq.s32.totalorder %s18, 1
      %p99 = por %p97, %p98
      %p100 = scmp.ne.s32.totalorder %s91, %s92
      %p101 = scmp.eq.s32.totalorder %s18, 0
      %p102 = por %p100, %p101
      %p103 = scmp.ne.s32.totalorder %s91, %s92
      %p104 = scmp.eq.s32.totalorder %s19, 1
      %p105 = por %p103, %p104
      %p107 = scmp.ne.s32.totalorder %s92, %s106
      %p108 = scmp.eq.s32.totalorder %s19, 0
      %p109 = por %p107, %p108
      %s110 = ssub.s32 %s13, %s20
      %p111 = scmp.eq.s32.totalorder %s110, 0
      %s113 = sadd.s32 %s112, 1
      %s114 = scalar_select %p111, %s112, %s113
      %p117 = pneg %p111
      %p118 = scmp.eq.s32.totalorder %s13, 1
      %p119 = por %p117, %p118
      %p120 = scmp.ne.s32.totalorder %s112, %s115
      %p121 = scmp.eq.s32.totalorder %s13, 0
      %p122 = por %p120, %p121
      %p123 = scmp.ne.s32.totalorder %s112, %s115
      %p124 = scmp.eq.s32.totalorder %s18, 1
      %p125 = por %p123, %p124
      %p126 = scmp.ne.s32.totalorder %s115, %s116
      %p127 = scmp.eq.s32.totalorder %s18, 0
      %p128 = por %p126, %p127
      %p129 = scmp.ne.s32.totalorder %s115, %s116
      %p130 = scmp.eq.s32.totalorder %s19, 1
      %p131 = por %p129, %p130
      %p133 = scmp.ne.s32.totalorder %s116, %s132
      %p134 = scmp.eq.s32.totalorder %s19, 0
      %p135 = por %p133, %p134
      %p136 = scmp.le.s32.totalorder 1, %s13
      %p137 = scmp.lt.s32.totalorder %s13, 3
      %p138 = pnand %p136, %p137
      %p139 = pneg %p138
      // Predicated region
      $region9: #{tpu_custom_call.1} parent=5 // pred_check
        _
      $region10: #{tpu_custom_call.1} parent=5 // pred_check_branch
        %141 = sbr.rel (%p138) target = $region12
      $region11: #{tpu_custom_call.1} parent=5 // pred_region
        %s142 = ssub.s32 %s13, 1
        // Predicated region
        $region13: #{tpu_custom_call.1} parent=11 // pred_check
          %p143 = pneg %p60
        $region14: #{tpu_custom_call.1} parent=11 // pred_check_branch
          %145 = sbr.rel (%p143) target = $region16
        $region15: #{tpu_custom_call.1} parent=11 // pred_region
          _
        $region16: #{tpu_custom_call.1} parent=11 // pred_fallthru
          _
        // Predicated region
        $region17: #{tpu_custom_call.1} parent=11 // pred_check
          %p146 = pneg %p81
        $region18: #{tpu_custom_call.1} parent=11 // pred_check_branch
          %148 = sbr.rel (%p146) target = $region20
        $region19: #{tpu_custom_call.1} parent=11 // pred_region
          _
        $region20: #{tpu_custom_call.1} parent=11 // pred_fallthru
          _
        // Predicated region
        $region21: #{tpu_custom_call.1} parent=11 // pred_check
          %p149 = pneg %p102
        $region22: #{tpu_custom_call.1} parent=11 // pred_check_branch
          %151 = sbr.rel (%p149) target = $region24
        $region23: #{tpu_custom_call.1} parent=11 // pred_region
          _
        $region24: #{tpu_custom_call.1} parent=11 // pred_fallthru
          _
      $region12: #{tpu_custom_call.1} parent=5 // pred_fallthru
        _
      %p152 = scmp.lt.s32.totalorder %s13, 2
      // Predicated region
      $region25: #{tpu_custom_call.1} parent=5 // pred_check
        %p153 = pneg %p152
      $region26: #{tpu_custom_call.1} parent=5 // pred_check_branch
        %155 = sbr.rel (%p153) target = $region28
      $region27: #{tpu_custom_call.1} parent=5 // pred_region
        // Predicated region
        $region29: #{tpu_custom_call.1} parent=27 // pred_check
          %p156 = pneg %p33
        $region30: #{tpu_custom_call.1} parent=27 // pred_check_branch
          %158 = sbr.rel (%p156) target = $region32
        $region31: #{tpu_custom_call.1} parent=27 // pred_region
          %s159 = smul.u32 16, %s13
          %p160 = scmp.lt.s32.totalorder %s159, 31
          %s161 = scalar_select %p160, %s159, 31
          %s162 = smul.addr %s161, 8
          %s163 = scalar_lea.vmem %s0, %s162
          %s164 = smul.u32 16, %s13
        $region32: #{tpu_custom_call.1} parent=27 // pred_fallthru
          _
      $region28: #{tpu_custom_call.1} parent=5 // pred_fallthru
        _
      %p165 = scmp.le.s32.totalorder 1, %s13
      %p166 = scmp.lt.s32.totalorder %s13, 3
      %p167 = pnand %p165, %p166
      %p168 = pneg %p167
      // Predicated region
      $region33: #{tpu_custom_call.1} parent=5 // pred_check
        _
      $region34: #{tpu_custom_call.1} parent=5 // pred_check_branch
        %170 = sbr.rel (%p167) target = $region36
      $region35: #{tpu_custom_call.1} parent=5 // pred_region
        %s171 = ssub.s32 %s13, 1
        %s172 = smul.u32 16, %s18
        %p173 = scmp.lt.s32.totalorder %s172, 31
        %s174 = scalar_select %p173, %s172, 31
        %s175 = smul.addr %s174, 8
        %s176 = scalar_lea.vmem %s0, %s175
        %p177 = pneg %p39
        %p178 = pneg %p36
        %p179 = pneg %p60
        %p180 = pneg %p57
        %p181 = pneg %p81
        %p182 = pneg %p78
        %p183 = pneg %p102
        %p184 = pneg %p99
        %p185 = pneg %p128
        %p186 = pneg %p125
        %s187 = sand.u32 %s115, 1
        %s188 = scalar_lea.sflag [#allocation3], %s187
        %s189 = sand.u32 %s115, 1
        %s190 = smul.addr %s189, 128
        %s191 = scalar_lea.vmem [#allocation2], %s190
        %s192 = smul.u32 16, %s18
        %p193 = scmp.lt.s32.totalorder %s192, 31
        %s194 = scalar_select %p193, %s192, 31
        %s195 = smul.addr %s194, 8
        %s196 = scalar_lea.vmem %s0, %s195
        %s197 = smul.u32 16, %s18
        %s198 = smul.u32 16, %s18
        %v199 = vld [vmem:[%s196] sm:$0xff]
        %v200 = vld [vmem:[%s196 + $0x8] sm:$0xff]
        %v201 = vld [vmem:[%s196 + $0x10] sm:$0xff]
        %v202 = vld [vmem:[%s196 + $0x18] sm:$0xff]
        %v203 = vld [vmem:[%s196 + $0x20] sm:$0xff]
        %v204 = vld [vmem:[%s196 + $0x28] sm:$0xff]
        %v205 = vld [vmem:[%s196 + $0x30] sm:$0xff]
        %v206 = vld [vmem:[%s196 + $0x38] sm:$0xff]
        %v207 = vld [vmem:[%s196 + $0x40] sm:$0xff]
        %v208 = vld [vmem:[%s196 + $0x48] sm:$0xff]
        %v209 = vld [vmem:[%s196 + $0x50] sm:$0xff]
        %v210 = vld [vmem:[%s196 + $0x58] sm:$0xff]
        %v211 = vld [vmem:[%s196 + $0x60] sm:$0xff]
        %v212 = vld [vmem:[%s196 + $0x68] sm:$0xff]
        %v213 = vld [vmem:[%s196 + $0x70] sm:$0xff]
        %v214 = vld [vmem:[%s196 + $0x78] sm:$0xff]
        %v215 = vld [vmem:[%s1] sm:$0xff]
        %vm216 = vcmask 64512
        %v218 = vsel %vm216, %v199, 0
        %v221 = vsel %vm216, %v200, 0
        %v224 = vsel %vm216, %v201, 0
        %v227 = vsel %vm216, %v202, 0
        %v230 = vsel %vm216, %v203, 0
        %v233 = vsel %vm216, %v204, 0
        %v236 = vsel %vm216, %v205, 0
        %v239 = vsel %vm216, %v206, 0
        %v242 = vsel %vm216, %v207, 0
        %v245 = vsel %vm216, %v208, 0
        %v248 = vsel %vm216, %v209, 0
        %v251 = vsel %vm216, %v210, 0
        %v254 = vsel %vm216, %v211, 0
        %v257 = vsel %vm216, %v212, 0
        %v260 = vsel %vm216, %v213, 0
        %v263 = vsel %vm216, %v214, 0
        %265 = vmatprep.subr.mxu0 0.0
        %266 = vmatpush1.msra.mxu0 0.0
        %267 = vmatprep.subr.mxu0 0.0
        %268 = vmatpush1.msra.mxu0 0.0
        %269 = vmatprep.subr.mxu0 0.0
        %270 = vmatpush1.msra.mxu0 0.0
        %271 = vmatprep.subr.mxu0 0.0
        %272 = vmatpush1.msra.mxu0 0.0
        %273 = vmatprep.subr.mxu0 0.0
        %274 = vmatpush1.msra.mxu0 0.0
        %275 = vmatprep.subr.mxu0 0.0
        %276 = vmatpush1.msra.mxu0 0.0
        %277 = vmatprep.subr.mxu0 0.0
        %278 = vmatpush1.msra.mxu0 0.0
        %279 = vmatprep.subr.mxu0 0.0
        %280 = vmatpush1.msra.mxu0 0.0
        %281 = vmatprep.subr.mxu0 0.0
        %282 = vmatpush1.msra.mxu0 0.0
        %283 = vmatprep.subr.mxu0 0.0
        %284 = vmatpush1.msra.mxu0 0.0
        %285 = vmatprep.subr.mxu0 0.0
        %286 = vmatpush1.msra.mxu0 0.0
        %287 = vmatprep.subr.mxu0 0.0
        %288 = vmatpush1.msra.mxu0 0.0
        %289 = vmatprep.subr.mxu0 0.0
        %290 = vmatpush1.msra.mxu0 0.0
        %291 = vmatprep.subr.mxu0 0.0
        %292 = vmatpush1.msra.mxu0 0.0
        %293 = vmatprep.subr.mxu0 0.0
        %294 = vmatpush1.msra.mxu0 0.0
        %295 = vmatprep.subr.mxu0 0.0
        %296 = vmatpush1.msra.mxu0 %v215
        %297 = vmatprep.subr.mxu0 0.0
        %298 = vmatpush2.msra.mxu0 0.0
        %299 = vmatprep.subr.mxu0 0.0
        %300 = vmatpush2.msra.mxu0 0.0
        %301 = vmatprep.subr.mxu0 0.0
        %302 = vmatpush2.msra.mxu0 0.0
        %303 = vmatprep.subr.mxu0 0.0
        %304 = vmatpush2.msra.mxu0 0.0
        %305 = vmatprep.subr.mxu0 0.0
        %306 = vmatpush2.msra.mxu0 0.0
        %307 = vmatprep.subr.mxu0 0.0
        %308 = vmatpush2.msra.mxu0 0.0
        %309 = vmatprep.subr.mxu0 0.0
        %310 = vmatpush2.msra.mxu0 0.0
        %311 = vmatprep.subr.mxu0 0.0
        %312 = vmatpush2.msra.mxu0 0.0
        %313 = vmatprep.subr.mxu0 0.0
        %314 = vmatpush2.msra.mxu0 0.0
        %315 = vmatprep.subr.mxu0 0.0
        %316 = vmatpush2.msra.mxu0 0.0
        %317 = vmatprep.subr.mxu0 0.0
        %318 = vmatpush2.msra.mxu0 0.0
        %319 = vmatprep.subr.mxu0 0.0
        %320 = vmatpush2.msra.mxu0 0.0
        %321 = vmatprep.subr.mxu0 0.0
        %322 = vmatpush2.msra.mxu0 0.0
        %323 = vmatprep.subr.mxu0 0.0
        %324 = vmatpush2.msra.mxu0 0.0
        %325 = vmatprep.subr.mxu0 0.0
        %326 = vmatpush2.msra.mxu0 0.0
        %327 = vmatprep.subr.mxu0 0.0
        %328 = vmatpush2.msra.mxu0 0.0
        %329 = vmatprep.mubr.f32.mxu0 0.0
        %330 = vmatmul.mubr.f32.gmra.mxu0 %v218
        %v331 = vpop.f32.mrf.mxu0
        %v332 = vadd.f32 0.0, %v331
        %v333 = vpop.f32.mrf.mxu0
        %334 = vmatprep.mubr.f32.mxu0 0.0
        %335 = vmatmul.mubr.f32.gmra.mxu0 %v221
        %v336 = vpop.f32.mrf.mxu0
        %v337 = vadd.f32 0.0, %v336
        %v338 = vpop.f32.mrf.mxu0
        %339 = vmatprep.mubr.f32.mxu0 0.0
        %340 = vmatmul.mubr.f32.gmra.mxu0 %v224
        %v341 = vpop.f32.mrf.mxu0
        %v342 = vadd.f32 0.0, %v341
        %v343 = vpop.f32.mrf.mxu0
        %344 = vmatprep.mubr.f32.mxu0 0.0
        %345 = vmatmul.mubr.f32.gmra.mxu0 %v227
        %v346 = vpop.f32.mrf.mxu0
        %v347 = vadd.f32 0.0, %v346
        %v348 = vpop.f32.mrf.mxu0
        %349 = vmatprep.mubr.f32.mxu0 0.0
        %350 = vmatmul.mubr.f32.gmra.mxu0 %v230
        %v351 = vpop.f32.mrf.mxu0
        %v352 = vadd.f32 0.0, %v351
        %v353 = vpop.f32.mrf.mxu0
        %354 = vmatprep.mubr.f32.mxu0 0.0
        %355 = vmatmul.mubr.f32.gmra.mxu0 %v233
        %v356 = vpop.f32.mrf.mxu0
        %v357 = vadd.f32 0.0, %v356
        %v358 = vpop.f32.mrf.mxu0
        %359 = vmatprep.mubr.f32.mxu0 0.0
        %360 = vmatmul.mubr.f32.gmra.mxu0 %v236
        %v361 = vpop.f32.mrf.mxu0
        %v362 = vadd.f32 0.0, %v361
        %v363 = vpop.f32.mrf.mxu0
        %364 = vmatprep.mubr.f32.mxu0 0.0
        %365 = vmatmul.mubr.f32.gmra.mxu0 %v239
        %v366 = vpop.f32.mrf.mxu0
        %v367 = vadd.f32 0.0, %v366
        %v368 = vpop.f32.mrf.mxu0
        %369 = vmatprep.mubr.f32.mxu0 0.0
        %370 = vmatmul.mubr.f32.gmra.mxu0 %v242
        %v371 = vpop.f32.mrf.mxu0
        %v372 = vadd.f32 0.0, %v371
        %v373 = vpop.f32.mrf.mxu0
        %374 = vmatprep.mubr.f32.mxu0 0.0
        %375 = vmatmul.mubr.f32.gmra.mxu0 %v245
        %v376 = vpop.f32.mrf.mxu0
        %v377 = vadd.f32 0.0, %v376
        %v378 = vpop.f32.mrf.mxu0
        %379 = vmatprep.mubr.f32.mxu0 0.0
        %380 = vmatmul.mubr.f32.gmra.mxu0 %v248
        %v381 = vpop.f32.mrf.mxu0
        %v382 = vadd.f32 0.0, %v381
        %v383 = vpop.f32.mrf.mxu0
        %384 = vmatprep.mubr.f32.mxu0 0.0
        %385 = vmatmul.mubr.f32.gmra.mxu0 %v251
        %v386 = vpop.f32.mrf.mxu0
        %v387 = vadd.f32 0.0, %v386
        %v388 = vpop.f32.mrf.mxu0
        %389 = vmatprep.mubr.f32.mxu0 0.0
        %390 = vmatmul.mubr.f32.gmra.mxu0 %v254
        %v391 = vpop.f32.mrf.mxu0
        %v392 = vadd.f32 0.0, %v391
        %v393 = vpop.f32.mrf.mxu0
        %394 = vmatprep.mubr.f32.mxu0 0.0
        %395 = vmatmul.mubr.f32.gmra.mxu0 %v257
        %v396 = vpop.f32.mrf.mxu0
        %v397 = vadd.f32 0.0, %v396
        %v398 = vpop.f32.mrf.mxu0
        %399 = vmatprep.mubr.f32.mxu0 0.0
        %400 = vmatmul.mubr.f32.gmra.mxu0 %v260
        %v401 = vpop.f32.mrf.mxu0
        %v402 = vadd.f32 0.0, %v401
        %v403 = vpop.f32.mrf.mxu0
        %404 = vmatprep.mubr.f32.mxu0 0.0
        %405 = vmatmul.mubr.f32.gmra.mxu0 %v263
        %v406 = vpop.f32.mrf.mxu0
        %v407 = vadd.f32 0.0, %v406
        %v408 = vpop.f32.mrf.mxu0
        %409 = vdwg.mxu0
        %v410 = vld [vmem:[%s2] sm:$0x1]
        %v411 = vlaneseq
        %v412 = vshrl.u32 %v411, 7
        %v413 = vsub.s32 0, %v412
        %v414 = vrot.slane %v410, %v413
        %v415 = vmul.f32 %v414, %v332
        %v416 = vmul.f32 %v414, %v337
        %v417 = vmul.f32 %v414, %v342
        %v418 = vmul.f32 %v414, %v347
        %v419 = vmul.f32 %v414, %v352
        %v420 = vmul.f32 %v414, %v357
        %v421 = vmul.f32 %v414, %v362
        %v422 = vmul.f32 %v414, %v367
        %v423 = vmul.f32 %v414, %v372
        %v424 = vmul.f32 %v414, %v377
        %v425 = vmul.f32 %v414, %v382
        %v426 = vmul.f32 %v414, %v387
        %v427 = vmul.f32 %v414, %v392
        %v428 = vmul.f32 %v414, %v397
        %v429 = vmul.f32 %v414, %v402
        %v430 = vmul.f32 %v414, %v407
        %v431 = vld [vmem:[%s2 + $0x1] sm:$0x1]
        %v432 = vlaneseq
        %v433 = vshrl.u32 %v432, 7
        %v434 = vsub.s32 0, %v433
        %v435 = vrot.slane %v431, %v434
        %v436 = vadd.f32 %v415, %v435
        %v437 = vadd.f32 %v416, %v435
        %v438 = vadd.f32 %v417, %v435
        %v439 = vadd.f32 %v418, %v435
        %v440 = vadd.f32 %v419, %v435
        %v441 = vadd.f32 %v420, %v435
        %v442 = vadd.f32 %v421, %v435
        %v443 = vadd.f32 %v422, %v435
        %v444 = vadd.f32 %v423, %v435
        %v445 = vadd.f32 %v424, %v435
        %v446 = vadd.f32 %v425, %v435
        %v447 = vadd.f32 %v426, %v435
        %v448 = vadd.f32 %v427, %v435
        %v449 = vadd.f32 %v428, %v435
        %v450 = vadd.f32 %v429, %v435
        %v451 = vadd.f32 %v430, %v435
        %v452 = vmul.f32 %v436, %v332
        %v453 = vmul.f32 %v437, %v337
        %v454 = vmul.f32 %v438, %v342
        %v455 = vmul.f32 %v439, %v347
        %v456 = vmul.f32 %v440, %v352
        %v457 = vmul.f32 %v441, %v357
        %v458 = vmul.f32 %v442, %v362
        %v459 = vmul.f32 %v443, %v367
        %v460 = vmul.f32 %v444, %v372
        %v461 = vmul.f32 %v445, %v377
        %v462 = vmul.f32 %v446, %v382
        %v463 = vmul.f32 %v447, %v387
        %v464 = vmul.f32 %v448, %v392
        %v465 = vmul.f32 %v449, %v397
        %v466 = vmul.f32 %v450, %v402
        %v467 = vmul.f32 %v451, %v407
        %v468 = vld [vmem:[%s2 + $0x2] sm:$0x1]
        %v469 = vlaneseq
        %v470 = vshrl.u32 %v469, 7
        %v471 = vsub.s32 0, %v470
        %v472 = vrot.slane %v468, %v471
        %v473 = vadd.f32 %v452, %v472
        %v474 = vadd.f32 %v453, %v472
        %v475 = vadd.f32 %v454, %v472
        %v476 = vadd.f32 %v455, %v472
        %v477 = vadd.f32 %v456, %v472
        %v478 = vadd.f32 %v457, %v472
        %v479 = vadd.f32 %v458, %v472
        %v480 = vadd.f32 %v459, %v472
        %v481 = vadd.f32 %v460, %v472
        %v482 = vadd.f32 %v461, %v472
        %v483 = vadd.f32 %v462, %v472
        %v484 = vadd.f32 %v463, %v472
        %v485 = vadd.f32 %v464, %v472
        %v486 = vadd.f32 %v465, %v472
        %v487 = vadd.f32 %v466, %v472
        %v488 = vadd.f32 %v467, %v472
        %v489 = vld [vmem:[%s3] sm:$0xff]
        %v490 = vld [vmem:[%s3 + $0x8] sm:$0xff]
        %v491 = vld [vmem:[%s3 + $0x10] sm:$0xff]
        %v492 = vld [vmem:[%s3 + $0x18] sm:$0xff]
        %v493 = vld [vmem:[%s3 + $0x20] sm:$0xff]
        %v494 = vld [vmem:[%s3 + $0x28] sm:$0xff]
        %v495 = vld [vmem:[%s3 + $0x30] sm:$0xff]
        %v496 = vld [vmem:[%s3 + $0x38] sm:$0xff]
        %v497 = vld [vmem:[%s3 + $0x40] sm:$0xff]
        %v498 = vld [vmem:[%s3 + $0x48] sm:$0xff]
        %v499 = vld [vmem:[%s3 + $0x50] sm:$0xff]
        %v500 = vld [vmem:[%s3 + $0x58] sm:$0xff]
        %v501 = vld [vmem:[%s3 + $0x60] sm:$0xff]
        %v502 = vld [vmem:[%s3 + $0x68] sm:$0xff]
        %v503 = vld [vmem:[%s3 + $0x70] sm:$0xff]
        %v504 = vld [vmem:[%s3 + $0x78] sm:$0xff]
        %505 = vmatprep.subr.mxu0 0.0
        %506 = vmatpush1.msra.mxu0 %v504
        %507 = vmatprep.subr.mxu0 0.0
        %508 = vmatpush1.msra.mxu0 %v503
        %509 = vmatprep.subr.mxu0 0.0
        %510 = vmatpush1.msra.mxu0 %v502
        %511 = vmatprep.subr.mxu0 0.0
        %512 = vmatpush1.msra.mxu0 %v501
        %513 = vmatprep.subr.mxu0 0.0
        %514 = vmatpush1.msra.mxu0 %v500
        %515 = vmatprep.subr.mxu0 0.0
        %516 = vmatpush1.msra.mxu0 %v499
        %517 = vmatprep.subr.mxu0 0.0
        %518 = vmatpush1.msra.mxu0 %v498
        %519 = vmatprep.subr.mxu0 0.0
        %520 = vmatpush1.msra.mxu0 %v497
        %521 = vmatprep.subr.mxu0 0.0
        %522 = vmatpush1.msra.mxu0 %v496
        %523 = vmatprep.subr.mxu0 0.0
        %524 = vmatpush1.msra.mxu0 %v495
        %525 = vmatprep.subr.mxu0 0.0
        %526 = vmatpush1.msra.mxu0 %v494
        %527 = vmatprep.subr.mxu0 0.0
        %528 = vmatpush1.msra.mxu0 %v493
        %529 = vmatprep.subr.mxu0 0.0
        %530 = vmatpush1.msra.mxu0 %v492
        %531 = vmatprep.subr.mxu0 0.0
        %532 = vmatpush1.msra.mxu0 %v491
        %533 = vmatprep.subr.mxu0 0.0
        %534 = vmatpush1.msra.mxu0 %v490
        %535 = vmatprep.subr.mxu0 0.0
        %536 = vmatpush1.msra.mxu0 %v489
        %537 = vmatprep.subr.mxu0 0.0
        %538 = vmatpush2.msra.mxu0 0.0
        %539 = vmatprep.subr.mxu0 0.0
        %540 = vmatpush2.msra.mxu0 0.0
        %541 = vmatprep.subr.mxu0 0.0
        %542 = vmatpush2.msra.mxu0 0.0
        %543 = vmatprep.subr.mxu0 0.0
        %544 = vmatpush2.msra.mxu0 0.0
        %545 = vmatprep.subr.mxu0 0.0
        %546 = vmatpush2.msra.mxu0 0.0
        %547 = vmatprep.subr.mxu0 0.0
        %548 = vmatpush2.msra.mxu0 0.0
        %549 = vmatprep.subr.mxu0 0.0
        %550 = vmatpush2.msra.mxu0 0.0
        %551 = vmatprep.subr.mxu0 0.0
        %552 = vmatpush2.msra.mxu0 0.0
        %553 = vmatprep.subr.mxu0 0.0
        %554 = vmatpush2.msra.mxu0 0.0
        %555 = vmatprep.subr.mxu0 0.0
        %556 = vmatpush2.msra.mxu0 0.0
        %557 = vmatprep.subr.mxu0 0.0
        %558 = vmatpush2.msra.mxu0 0.0
        %559 = vmatprep.subr.mxu0 0.0
        %560 = vmatpush2.msra.mxu0 0.0
        %561 = vmatprep.subr.mxu0 0.0
        %562 = vmatpush2.msra.mxu0 0.0
        %563 = vmatprep.subr.mxu0 0.0
        %564 = vmatpush2.msra.mxu0 0.0
        %565 = vmatprep.subr.mxu0 0.0
        %566 = vmatpush2.msra.mxu0 0.0
        %567 = vmatprep.subr.mxu0 0.0
        %568 = vmatpush2.msra.mxu0 0.0
        %569 = vmatprep.mubr.f32.mxu0 0.0
        %570 = vmatmul.mubr.f32.gmra.mxu0 %v473
        %v571 = vpop.f32.mrf.mxu0
        %v572 = vadd.f32 0.0, %v571
        %v573 = vpop.f32.mrf.mxu0
        %574 = vmatprep.mubr.f32.mxu0 0.0
        %575 = vmatmul.mubr.f32.gmra.mxu0 %v474
        %v576 = vpop.f32.mrf.mxu0
        %v577 = vadd.f32 0.0, %v576
        %v578 = vpop.f32.mrf.mxu0
        %579 = vmatprep.mubr.f32.mxu0 0.0
        %580 = vmatmul.mubr.f32.gmra.mxu0 %v475
        %v581 = vpop.f32.mrf.mxu0
        %v582 = vadd.f32 0.0, %v581
        %v583 = vpop.f32.mrf.mxu0
        %584 = vmatprep.mubr.f32.mxu0 0.0
        %585 = vmatmul.mubr.f32.gmra.mxu0 %v476
        %v586 = vpop.f32.mrf.mxu0
        %v587 = vadd.f32 0.0, %v586
        %v588 = vpop.f32.mrf.mxu0
        %589 = vmatprep.mubr.f32.mxu0 0.0
        %590 = vmatmul.mubr.f32.gmra.mxu0 %v477
        %v591 = vpop.f32.mrf.mxu0
        %v592 = vadd.f32 0.0, %v591
        %v593 = vpop.f32.mrf.mxu0
        %594 = vmatprep.mubr.f32.mxu0 0.0
        %595 = vmatmul.mubr.f32.gmra.mxu0 %v478
        %v596 = vpop.f32.mrf.mxu0
        %v597 = vadd.f32 0.0, %v596
        %v598 = vpop.f32.mrf.mxu0
        %599 = vmatprep.mubr.f32.mxu0 0.0
        %600 = vmatmul.mubr.f32.gmra.mxu0 %v479
        %v601 = vpop.f32.mrf.mxu0
        %v602 = vadd.f32 0.0, %v601
        %v603 = vpop.f32.mrf.mxu0
        %604 = vmatprep.mubr.f32.mxu0 0.0
        %605 = vmatmul.mubr.f32.gmra.mxu0 %v480
        %v606 = vpop.f32.mrf.mxu0
        %v607 = vadd.f32 0.0, %v606
        %v608 = vpop.f32.mrf.mxu0
        %609 = vmatprep.mubr.f32.mxu0 0.0
        %610 = vmatmul.mubr.f32.gmra.mxu0 %v481
        %v611 = vpop.f32.mrf.mxu0
        %v612 = vadd.f32 0.0, %v611
        %v613 = vpop.f32.mrf.mxu0
        %614 = vmatprep.mubr.f32.mxu0 0.0
        %615 = vmatmul.mubr.f32.gmra.mxu0 %v482
        %v616 = vpop.f32.mrf.mxu0
        %v617 = vadd.f32 0.0, %v616
        %v618 = vpop.f32.mrf.mxu0
        %619 = vmatprep.mubr.f32.mxu0 0.0
        %620 = vmatmul.mubr.f32.gmra.mxu0 %v483
        %v621 = vpop.f32.mrf.mxu0
        %v622 = vadd.f32 0.0, %v621
        %v623 = vpop.f32.mrf.mxu0
        %624 = vmatprep.mubr.f32.mxu0 0.0
        %625 = vmatmul.mubr.f32.gmra.mxu0 %v484
        %v626 = vpop.f32.mrf.mxu0
        %v627 = vadd.f32 0.0, %v626
        %v628 = vpop.f32.mrf.mxu0
        %629 = vmatprep.mubr.f32.mxu0 0.0
        %630 = vmatmul.mubr.f32.gmra.mxu0 %v485
        %v631 = vpop.f32.mrf.mxu0
        %v632 = vadd.f32 0.0, %v631
        %v633 = vpop.f32.mrf.mxu0
        %634 = vmatprep.mubr.f32.mxu0 0.0
        %635 = vmatmul.mubr.f32.gmra.mxu0 %v486
        %v636 = vpop.f32.mrf.mxu0
        %v637 = vadd.f32 0.0, %v636
        %v638 = vpop.f32.mrf.mxu0
        %639 = vmatprep.mubr.f32.mxu0 0.0
        %640 = vmatmul.mubr.f32.gmra.mxu0 %v487
        %v641 = vpop.f32.mrf.mxu0
        %v642 = vadd.f32 0.0, %v641
        %v643 = vpop.f32.mrf.mxu0
        %644 = vmatprep.mubr.f32.mxu0 0.0
        %645 = vmatmul.mubr.f32.gmra.mxu0 %v488
        %v646 = vpop.f32.mrf.mxu0
        %v647 = vadd.f32 0.0, %v646
        %v648 = vpop.f32.mrf.mxu0
        %649 = vdwg.mxu0
        %650 = vst [vmem:[%s191] sm:$0xff] %v572
        %651 = vst [vmem:[%s191 + $0x8] sm:$0xff] %v577
        %652 = vst [vmem:[%s191 + $0x10] sm:$0xff] %v582
        %653 = vst [vmem:[%s191 + $0x18] sm:$0xff] %v587
        %654 = vst [vmem:[%s191 + $0x20] sm:$0xff] %v592
        %655 = vst [vmem:[%s191 + $0x28] sm:$0xff] %v597
        %656 = vst [vmem:[%s191 + $0x30] sm:$0xff] %v602
        %657 = vst [vmem:[%s191 + $0x38] sm:$0xff] %v607
        %658 = vst [vmem:[%s191 + $0x40] sm:$0xff] %v612
        %659 = vst [vmem:[%s191 + $0x48] sm:$0xff] %v617
        %660 = vst [vmem:[%s191 + $0x50] sm:$0xff] %v622
        %661 = vst [vmem:[%s191 + $0x58] sm:$0xff] %v627
        %662 = vst [vmem:[%s191 + $0x60] sm:$0xff] %v632
        %663 = vst [vmem:[%s191 + $0x68] sm:$0xff] %v637
        %664 = vst [vmem:[%s191 + $0x70] sm:$0xff] %v642
        %665 = vst [vmem:[%s191 + $0x78] sm:$0xff] %v647
        %s666 = sand.u32 %s115, 1
        %s667 = scalar_lea.sflag [#allocation3], %s666
        %s668 = sand.u32 %s115, 1
        %s669 = smul.addr %s668, 128
        %s670 = scalar_lea.vmem [#allocation2], %s669
        // Predicated region
        $region37: #{tpu_custom_call.1} parent=35 // pred_check
          %p671 = pneg %p125
        $region38: #{tpu_custom_call.1} parent=35 // pred_check_branch
          %673 = sbr.rel (%p671) target = $region40
        $region39: #{tpu_custom_call.1} parent=35 // pred_region
          %s674 = smul.u32 16, %s18
          %s676 = ssub.s32 2048, 2048
          %677 = vsyncadd %s667, %s676
          %s678 = smul.addr %s674, 128
          %s679 = scalar_lea.hbm %s4, %s678
          %s680 = sshll.u32 %s670, 4
          %s681 = int_to_ptr.vmem [resolvable:$true] %s680
          %686 = dma.vmem_to_hbm [thread:$0]  %s681, 2048, %s679, %s667, 128, 128, 8
        $region40: #{tpu_custom_call.1} parent=35 // pred_fallthru
          _
      $region36: #{tpu_custom_call.1} parent=5 // pred_fallthru
        _
      %p687 = scmp.le.s32.totalorder 2, %s13
      // Predicated region
      $region41: #{tpu_custom_call.1} parent=5 // pred_check
        %p688 = pneg %p687
      $region42: #{tpu_custom_call.1} parent=5 // pred_check_branch
        %690 = sbr.rel (%p688) target = $region44
      $region43: #{tpu_custom_call.1} parent=5 // pred_region
        %s691 = ssub.s32 %s13, 2
        // Predicated region
        $region45: #{tpu_custom_call.1} parent=43 // pred_check
          %p692 = pneg %p131
        $region46: #{tpu_custom_call.1} parent=43 // pred_check_branch
          %694 = sbr.rel (%p692) target = $region48
        $region47: #{tpu_custom_call.1} parent=43 // pred_region
          %s695 = sand.u32 %s116, 1
          %s696 = scalar_lea.sflag [#allocation3], %s695
          %s697 = sand.u32 %s116, 1
          %s698 = smul.addr %s697, 128
          %s699 = scalar_lea.vmem [#allocation2], %s698
          %700 = dma.done %s696, 2048
        $region48: #{tpu_custom_call.1} parent=43 // pred_fallthru
          _
      $region44: #{tpu_custom_call.1} parent=5 // pred_fallthru
        _
    $region6: #{tpu_custom_call.1} parent=1 // loop_footer
      %s17 = sadd.s32 1, %s13
    $region7: #{tpu_custom_call.1} parent=1 // loop_footer_branch
      %12 = sbr.rel target = $region3
    $region8: #{tpu_custom_call.1} parent=1 // loop_exit
      _
    %701 = vsyncpa [#allocation3], 1
    %s702 = scalar_lea.sflag [#allocation3], 1
    %703 = vsyncpa %s702, 1

</llo_original>
